<compile_context>
chip_gen: v5e
topology: v5e:2x2
jax: 0.10.0
libtpu: 0.0.40
codegen_flags: <defaults>
</compile_context>

<pallas_src>
import functools

import jax
import jax.numpy as jnp
from jax.experimental import pallas as pl
from jax.experimental.pallas import tpu as pltpu  # noqa: F401  (TPU backend)


def additive_attn_kernel(q_ref, k_ref, v_ref, wq_ref, wk_ref, wv_ref, vl_ref,
                         o_ref, *, B):
    BK, _ = k_ref.shape
    K = BK // B                      # padded key length (multiple of 8)
    H = wq_ref.shape[1]

    # Linear projections (no bias): single collapsed 2-D MXU matmuls with f32
    # accumulation — no broadcast of the shared weights over the batch.
    qp = jnp.dot(q_ref[...], wq_ref[...],
                 preferred_element_type=jnp.float32)            # (B, H)
    kp = jnp.dot(k_ref[...], wk_ref[...],
                 preferred_element_type=jnp.float32)            # (B*K, H)
    # Layout-preserving split of the leading dim (K % 8 == 0, lane dim kept).
    kp = kp.reshape(B, K, H)                                    # (B, K, H)

    # features = tanh(q.unsqueeze(2) + k.unsqueeze(1)); Q == 1 so this is just
    # (B, K, H) — no (Q, K, H) blow-up.  tanh runs on the EUP.
    feats = jnp.tanh(qp[:, None, :] + kp)                       # (B, K, H)

    # scores = w_v(features).squeeze(-1): H-reduction on the MXU dot path;
    # K ends up on the lane axis, where the masked softmax wants it.
    wv_b = jnp.broadcast_to(wv_ref[...], (B, 1, H))             # tiny (B,1,H)
    scores = jnp.einsum('bqh,bkh->bqk', wv_b, feats,
                        preferred_element_type=jnp.float32)     # (B, 1, K)

    # Masked softmax along keys (same -1e6 fill as d2l.sequence_mask); the
    # zero-padded key positions (k >= original K) are masked out too.
    kidx = jax.lax.broadcasted_iota(jnp.int32, scores.shape, 2)
    scores = jnp.where(kidx < vl_ref[...], scores, jnp.float32(-1000000.0))
    scores = scores - jnp.max(scores, axis=-1, keepdims=True)
    p = jnp.exp(scores)
    inv_denom = pl.reciprocal(jnp.sum(p, axis=-1, keepdims=True), approx=True)
    attn = p * inv_denom                                        # (B, 1, K)

    # dropout(attn) in eval mode == attn; bmm with values (batched MXU matmul).
    out = jnp.einsum('bqk,bkv->bqv', attn, v_ref[...],
                     preferred_element_type=jnp.float32)        # (B, 1, V)

    # out.squeeze(1): emit a lane-dense 2-D (B, V) slab.
    o_ref[...] = out[:, 0, :]


def additive_attention(queries, keys, values, valid_lens, W_q, W_k, w_v):
    B, Q, Dq = queries.shape
    _, K, Dk = keys.shape
    _, _, V = values.shape
    assert Q == 1, "module squeezes dim 1, so Q must be 1"

    # Pad the key axis to a sublane multiple so in-kernel reshapes are free.
    K_pad = ((K + 7) // 8) * 8
    pad = K_pad - K
    if pad:
        keys = jnp.pad(keys, ((0, 0), (0, pad), (0, 0)))
        values = jnp.pad(values, ((0, 0), (0, pad), (0, 0)))

    q2d = queries.reshape(B, Dq)              # squeeze Q == 1
    k2d = keys.reshape(B * K_pad, Dk)         # collapse batch for one big dot
    vl = valid_lens.astype(jnp.int32).reshape(B, 1, 1)

    # No grid: the whole problem fits in VMEM; every input is mapped as a
    # single full-array block (default BlockSpecs), one kernel invocation.
    out = pl.pallas_call(
        functools.partial(additive_attn_kernel, B=B),
        out_shape=jax.ShapeDtypeStruct((B, V), jnp.float32),
    )(q2d, k2d, values, W_q, W_k, w_v, vl)
    return out                                                  # (B, V)


def reference(queries, keys, values, valid_lens, W_q, W_k, w_v):
    qp = queries @ W_q                                          # (B, Q, H)
    kp = keys @ W_k                                             # (B, K, H)
    feats = jnp.tanh(qp[:, :, None, :] + kp[:, None, :, :])     # (B, Q, K, H)
    scores = jnp.einsum("bqkh,h->bqk", feats, w_v[0])           # (B, Q, K)
    kidx = jnp.arange(scores.shape[-1])[None, None, :]
    mask = kidx < valid_lens[:, None, None]
    scores = jnp.where(mask, scores, -1000000.0)
    attn = jax.nn.softmax(scores, axis=-1)
    out = jnp.einsum("bqk,bkv->bqv", attn, values)
    return out[:, 0, :]


if __name__ == "__main__":
    # Shapes implied by the module's example usage:
    #   queries = normal(0,1,(2,1,2)); values = arange(40).reshape(1,10,4).repeat(2,1,1)
    #   valid_lens = [2, 6]; keys -> (2, 10, key_size=2); num_hiddens = 8
    B, Q, K = 2, 1, 10
    query_size, key_size, num_hiddens, value_size = 2, 2, 8, 4

    key = jax.random.PRNGKey(0)
    k_q, k_k, k_wq, k_wk, k_wv = jax.random.split(key, 5)

    queries = jax.random.normal(k_q, (B, Q, query_size), dtype=jnp.float32)
    keys = jax.random.normal(k_k, (B, K, key_size), dtype=jnp.float32)
    values = jnp.tile(
        jnp.arange(K * value_size, dtype=jnp.float32).reshape(1, K, value_size),
        (B, 1, 1))
    valid_lens = jnp.array([2, 6], dtype=jnp.int32)

    # Deterministic parameter init (stored as (in, out) — transpose of nn.Linear.weight).
    W_q = 0.1 * jax.random.normal(k_wq, (query_size, num_hiddens), dtype=jnp.float32)
    W_k = 0.1 * jax.random.normal(k_wk, (key_size, num_hiddens), dtype=jnp.float32)
    w_v = 0.1 * jax.random.normal(k_wv, (1, num_hiddens), dtype=jnp.float32)

    out = additive_attention(queries, keys, values, valid_lens, W_q, W_k, w_v)
    out = jax.block_until_ready(out)

    ref = reference(queries, keys, values, valid_lens, W_q, W_k, w_v)
    assert out.shape == (B, value_size), out.shape
    # Tolerance slightly relaxed because the softmax denominator uses the
    # EUP approximate reciprocal (pl.reciprocal(..., approx=True)).
    assert jnp.allclose(out, ref, atol=5e-3, rtol=5e-3), (out, ref)

    print("KERNEL_OK")
</pallas_src>

<mosaic_0001>
module attributes {stable_mosaic.version = 11 : i64} {
  func.func @additive_attn_kernel(%arg0: memref<2x2xf32, #tpu.memory_space<vmem>>, %arg1: memref<32x2xf32, #tpu.memory_space<vmem>>, %arg2: memref<2x16x4xf32, #tpu.memory_space<vmem>>, %arg3: memref<2x8xf32, #tpu.memory_space<vmem>>, %arg4: memref<2x8xf32, #tpu.memory_space<vmem>>, %arg5: memref<1x8xf32, #tpu.memory_space<vmem>>, %arg6: memref<2x1x1xi32, #tpu.memory_space<vmem>>, %arg7: memref<2x4xf32, #tpu.memory_space<vmem>>) attributes {dimension_semantics = [], scalar_prefetch = 0 : i64, scratch_operands = 0 : i64, tpu.core_type = #tpu.core_type<tc>} {
    %c0 = arith.constant 0 : index
    %c0_0 = arith.constant 0 : index
    %0 = vector.load %arg0[%c0, %c0_0] : memref<2x2xf32, #tpu.memory_space<vmem>>, vector<2x2xf32>
    %c0_1 = arith.constant 0 : index
    %c0_2 = arith.constant 0 : index
    %1 = vector.load %arg3[%c0_1, %c0_2] : memref<2x8xf32, #tpu.memory_space<vmem>>, vector<2x8xf32>
    %cst = arith.constant dense<0.000000e+00> : vector<2x8xf32>
    %2 = tpu.matmul %0, %1, %cst {dimension_numbers = #tpu.dot_dimension_numbers<[1], [0], [0], [1], [0, 0, 1, 1], [], []>} : vector<2x2xf32>, vector<2x8xf32>, vector<2x8xf32> -> vector<2x8xf32>
    %c0_3 = arith.constant 0 : index
    %c0_4 = arith.constant 0 : index
    %3 = vector.load %arg1[%c0_3, %c0_4] : memref<32x2xf32, #tpu.memory_space<vmem>>, vector<32x2xf32>
    %c0_5 = arith.constant 0 : index
    %c0_6 = arith.constant 0 : index
    %4 = vector.load %arg4[%c0_5, %c0_6] : memref<2x8xf32, #tpu.memory_space<vmem>>, vector<2x8xf32>
    %cst_7 = arith.constant dense<0.000000e+00> : vector<32x8xf32>
    %5 = tpu.matmul %3, %4, %cst_7 {dimension_numbers = #tpu.dot_dimension_numbers<[1], [0], [0], [1], [0, 0, 1, 1], [], []>} : vector<32x2xf32>, vector<2x8xf32>, vector<32x8xf32> -> vector<32x8xf32>
    %6 = vector.shape_cast %5 : vector<32x8xf32> to vector<2x16x8xf32>
    %7 = vector.shape_cast %2 : vector<2x8xf32> to vector<2x1x8xf32>
    %8 = vector.broadcast %7 : vector<2x1x8xf32> to vector<2x16x8xf32>
    %9 = arith.addf %8, %6 : vector<2x16x8xf32>
    %10 = math.tanh %9 : vector<2x16x8xf32>
    %c0_8 = arith.constant 0 : index
    %c0_9 = arith.constant 0 : index
    %11 = vector.load %arg5[%c0_8, %c0_9] : memref<1x8xf32, #tpu.memory_space<vmem>>, vector<1x8xf32>
    %12 = vector.shape_cast %11 : vector<1x8xf32> to vector<1x1x8xf32>
    %13 = vector.broadcast %12 : vector<1x1x8xf32> to vector<2x1x8xf32>
    "tpu.trace_start"() <{level = 10 : i32, message = "bqh,bkh->bqk"}> : () -> ()
    %cst_10 = arith.constant dense<0.000000e+00> : vector<2x1x16xf32>
    %14 = tpu.matmul %13, %10, %cst_10 {dimension_numbers = #tpu.dot_dimension_numbers<[2], [2], [1], [1], [0, 0, 0, 1, 1, 1], [0], [0]>} : vector<2x1x8xf32>, vector<2x16x8xf32>, vector<2x1x16xf32> -> vector<2x1x16xf32>
    "tpu.trace_stop"() : () -> ()
    %15 = tpu.iota {dimensions = array<i32: 2>} : vector<2x1x16xi32>
    %c0_11 = arith.constant 0 : index
    %c0_12 = arith.constant 0 : index
    %c0_13 = arith.constant 0 : index
    %16 = vector.load %arg6[%c0_11, %c0_12, %c0_13] : memref<2x1x1xi32, #tpu.memory_space<vmem>>, vector<2x1x1xi32>
    %17 = vector.broadcast %16 : vector<2x1x1xi32> to vector<2x1x16xi32>
    %18 = arith.cmpi slt, %15, %17 : vector<2x1x16xi32>
    %cst_14 = arith.constant -1.000000e+06 : f32
    %19 = vector.broadcast %cst_14 : f32 to vector<2x1x16xf32>
    %20 = arith.select %18, %14, %19 : vector<2x1x16xi1>, vector<2x1x16xf32>
    %cst_15 = arith.constant dense<0xFF800000> : vector<2x1xf32>
    %21 = vector.multi_reduction <maximumf>, %20, %cst_15 [2] : vector<2x1x16xf32> to vector<2x1xf32>
    %22 = vector.shape_cast %21 : vector<2x1xf32> to vector<2x1x1xf32>
    %23 = vector.broadcast %22 : vector<2x1x1xf32> to vector<2x1x16xf32>
    %24 = arith.subf %20, %23 : vector<2x1x16xf32>
    %25 = math.exp %24 : vector<2x1x16xf32>
    %cst_16 = arith.constant dense<0.000000e+00> : vector<2x1xf32>
    %26 = vector.multi_reduction <add>, %25, %cst_16 [2] : vector<2x1x16xf32> to vector<2x1xf32>
    %27 = vector.shape_cast %26 : vector<2x1xf32> to vector<2x1x1xf32>
    %28 = tpu.reciprocal %27 {approx = true} : vector<2x1x1xf32> -> vector<2x1x1xf32>
    %29 = vector.broadcast %28 : vector<2x1x1xf32> to vector<2x1x16xf32>
    %30 = arith.mulf %25, %29 : vector<2x1x16xf32>
    %c0_17 = arith.constant 0 : index
    %c0_18 = arith.constant 0 : index
    %c0_19 = arith.constant 0 : index
    %31 = vector.load %arg2[%c0_17, %c0_18, %c0_19] : memref<2x16x4xf32, #tpu.memory_space<vmem>>, vector<2x16x4xf32>
    "tpu.trace_start"() <{level = 10 : i32, message = "bqk,bkv->bqv"}> : () -> ()
    %cst_20 = arith.constant dense<0.000000e+00> : vector<2x1x4xf32>
    %32 = tpu.matmul %30, %31, %cst_20 {dimension_numbers = #tpu.dot_dimension_numbers<[2], [1], [1], [2], [0, 0, 0, 1, 1, 2], [0], [0]>} : vector<2x1x16xf32>, vector<2x16x4xf32>, vector<2x1x4xf32> -> vector<2x1x4xf32>
    "tpu.trace_stop"() : () -> ()
    %33 = vector.shape_cast %32 : vector<2x1x4xf32> to vector<2x4xf32>
    %c0_21 = arith.constant 0 : index
    %c0_22 = arith.constant 0 : index
    %34 = vector.load %arg7[%c0_21, %c0_22] : memref<2x4xf32, #tpu.memory_space<vmem>>, vector<2x4xf32>
    tpu.vector_store %arg7[%c0_21, %c0_22], %33 {strides = array<i32>} : memref<2x4xf32, #tpu.memory_space<vmem>>, vector<2x4xf32>,
    return
  }
}

</mosaic_0001>

<llo_original>
// kernel: tpu_custom_call.1
$region0: #{tpu_custom_call.1}
  #allocation0 [shape = 'u32[]', space=smem, size = 0x4, offset = 0x4, fixed_abs, tag = 'smem constant byte address 0x4 - core index']
  #allocation1 [shape = 'u32[72,128]{1,0:T(1,128)}', space=vmem, size = 0x9000, scoped, tag = 'internal scratch']
  %s0 = inlined_call_operand.vmem [shape: f32[2,2], index: 0, kind: input, shape index: {}]
  %s1 = inlined_call_operand.vmem [shape: f32[32,2], index: 1, kind: input, shape index: {}]
  %s2 = inlined_call_operand.vmem [shape: f32[2,16,4], index: 2, kind: input, shape index: {}]
  %s3 = inlined_call_operand.vmem [shape: f32[2,8], index: 3, kind: input, shape index: {}]
  %s4 = inlined_call_operand.vmem [shape: f32[2,8], index: 4, kind: input, shape index: {}]
  %s5 = inlined_call_operand.vmem [shape: f32[1,8], index: 5, kind: input, shape index: {}]
  %s6 = inlined_call_operand.vmem [shape: s32[2,1,1], index: 6, kind: input, shape index: {}]
  %s7 = inlined_call_operand.hbm [shape: f32[2,4], index: 7, kind: output, shape index: {}]
  %s8 = sld [smem:[#allocation0]]
  $region38: #{tpu_custom_call.1} parent=0
    _
  %s10 = ssub.s32 1, %s8
  %s11 = scalar_select 0, %s10, %s8
  $region1: #{tpu_custom_call.1} parent=0
    #allocation2 [shape = 'u8[1024]{0}', space=vmem, size = 0x400, scoped, tag = 'output window, operand 0, single buffered']
    #allocation3 [shape = 's32[1]{0}', space=sflag, size = 0x4, scoped, tag = 'scoped memory for tpu_custom_call.1']
    %12 = vsyncpa [#allocation3], 0
    // Predicated region
    $region2: #{tpu_custom_call.1} parent=1 // pred_check
      _
    $region3: #{tpu_custom_call.1} parent=1 // pred_check_branch
      %14 = sbr.rel (0) target = $region5
    $region4: #{tpu_custom_call.1} parent=1 // pred_region
      _
    $region5: #{tpu_custom_call.1} parent=1 // pred_fallthru
      _
    // Predicated region
    $region6: #{tpu_custom_call.1} parent=1 // pred_check
      _
    $region7: #{tpu_custom_call.1} parent=1 // pred_check_branch
      %16 = sbr.rel (0) target = $region9
    $region8: #{tpu_custom_call.1} parent=1 // pred_region
      _
    $region9: #{tpu_custom_call.1} parent=1 // pred_fallthru
      _
    // Predicated region
    $region10: #{tpu_custom_call.1} parent=1 // pred_check
      _
    $region11: #{tpu_custom_call.1} parent=1 // pred_check_branch
      %18 = sbr.rel (0) target = $region13
    $region12: #{tpu_custom_call.1} parent=1 // pred_region
      _
    $region13: #{tpu_custom_call.1} parent=1 // pred_fallthru
      _
    // Predicated region
    $region14: #{tpu_custom_call.1} parent=1 // pred_check
      _
    $region15: #{tpu_custom_call.1} parent=1 // pred_check_branch
      %20 = sbr.rel (0) target = $region17
    $region16: #{tpu_custom_call.1} parent=1 // pred_region
      _
    $region17: #{tpu_custom_call.1} parent=1 // pred_fallthru
      _
    // Predicated region
    $region18: #{tpu_custom_call.1} parent=1 // pred_check
      _
    $region19: #{tpu_custom_call.1} parent=1 // pred_check_branch
      %22 = sbr.rel (0) target = $region21
    $region20: #{tpu_custom_call.1} parent=1 // pred_region
      _
    $region21: #{tpu_custom_call.1} parent=1 // pred_fallthru
      _
    // Predicated region
    $region22: #{tpu_custom_call.1} parent=1 // pred_check
      _
    $region23: #{tpu_custom_call.1} parent=1 // pred_check_branch
      %24 = sbr.rel (0) target = $region25
    $region24: #{tpu_custom_call.1} parent=1 // pred_region
      _
    $region25: #{tpu_custom_call.1} parent=1 // pred_fallthru
      _
    // Predicated region
    $region26: #{tpu_custom_call.1} parent=1 // pred_check
      _
    $region27: #{tpu_custom_call.1} parent=1 // pred_check_branch
      %26 = sbr.rel (0) target = $region29
    $region28: #{tpu_custom_call.1} parent=1 // pred_region
      _
    $region29: #{tpu_custom_call.1} parent=1 // pred_fallthru
      _
    %v27 = vld [vmem:[%s0] sm:$0x3]
    %v28 = vld [vmem:[%s3] sm:$0x3]
    %vm29 = vcmask 15360
    %v31 = vsel %vm29, %v27, 0
    %vm33 = vcmask 1041408
    %v35 = vsel %vm33, %v28, 0
    %37 = vmatpush.msra.mxu0 0.0
    %38 = vmatpush.msra.mxu0 0.0
    %39 = vmatpush.msra.mxu0 0.0
    %40 = vmatpush.msra.mxu0 0.0
    %41 = vmatpush.msra.mxu0 0.0
    %42 = vmatpush.msra.mxu0 0.0
    %43 = vmatpush.msra.mxu0 0.0
    %44 = vmatpush.msra.mxu0 0.0
    %45 = vmatpush.msra.mxu0 0.0
    %46 = vmatpush.msra.mxu0 0.0
    %47 = vmatpush.msra.mxu0 0.0
    %48 = vmatpush.msra.mxu0 0.0
    %49 = vmatpush.msra.mxu0 0.0
    %50 = vmatpush.msra.mxu0 0.0
    %51 = vmatpush.msra.mxu0 0.0
    %52 = vmatpush.msra.mxu0 %v35
    %53 = vmatmul.f32.gmra.mxu0 %v31
    %v54 = vpop.f32.mrf.mxu0
    %v55 = vadd.f32 0.0, %v54
    %56 = vdwg.mxu0
    %v57 = vld [vmem:[%s1] sm:$0xff]
    %v58 = vld [vmem:[%s1 + $0x8] sm:$0xff]
    %v59 = vld [vmem:[%s1 + $0x10] sm:$0xff]
    %v60 = vld [vmem:[%s1 + $0x18] sm:$0xff]
    %v61 = vld [vmem:[%s4] sm:$0x3]
    %v63 = vsel %vm29, %v57, 0
    %v66 = vsel %vm29, %v58, 0
    %v69 = vsel %vm29, %v59, 0
    %v72 = vsel %vm29, %v60, 0
    %v75 = vsel %vm33, %v61, 0
    %77 = vmatpush.msra.mxu0 0.0
    %78 = vmatpush.msra.mxu0 0.0
    %79 = vmatpush.msra.mxu0 0.0
    %80 = vmatpush.msra.mxu0 0.0
    %81 = vmatpush.msra.mxu0 0.0
    %82 = vmatpush.msra.mxu0 0.0
    %83 = vmatpush.msra.mxu0 0.0
    %84 = vmatpush.msra.mxu0 0.0
    %85 = vmatpush.msra.mxu0 0.0
    %86 = vmatpush.msra.mxu0 0.0
    %87 = vmatpush.msra.mxu0 0.0
    %88 = vmatpush.msra.mxu0 0.0
    %89 = vmatpush.msra.mxu0 0.0
    %90 = vmatpush.msra.mxu0 0.0
    %91 = vmatpush.msra.mxu0 0.0
    %92 = vmatpush.msra.mxu0 %v75
    %93 = vmatmul.f32.gmra.mxu0 %v63
    %v94 = vpop.f32.mrf.mxu0
    %v95 = vadd.f32 0.0, %v94
    %96 = vmatmul.f32.gmra.mxu0 %v66
    %v97 = vpop.f32.mrf.mxu0
    %v98 = vadd.f32 0.0, %v97
    %99 = vmatmul.f32.gmra.mxu0 %v69
    %v100 = vpop.f32.mrf.mxu0
    %v101 = vadd.f32 0.0, %v100
    %102 = vmatmul.f32.gmra.mxu0 %v72
    %v103 = vpop.f32.mrf.mxu0
    %v104 = vadd.f32 0.0, %v103
    %105 = vdwg.mxu0
    %v107 = vrot.slane %v55, 1
    %v108 = vperm.slane %v55, 0
    %v109 = vperm.slane %v107, 0
    %v112 = vadd.f32 %v108, %v95
    %v113 = vadd.f32 %v108, %v98
    %v114 = vadd.f32 %v109, %v101
    %v115 = vadd.f32 %v109, %v104
    %v116 = vtanh.pop %v112
    %v117 = vtanh.pop %v113
    %v118 = vtanh.pop %v114
    %v119 = vtanh.pop %v115
    %v120 = vld [vmem:[%s5] sm:$0x1]
    %vm121 = vcmask 64512
    %v123 = vsel %vm121, %v120, 0
    %v126 = vsel %vm121, %v116, 0
    %v129 = vsel %vm121, %v117, 0
    %131 = vmatpush.xpose.msra.mxu0 0.0
    %132 = vmatpush.xpose.msra.mxu0 0.0
    %133 = vmatpush.xpose.msra.mxu0 0.0
    %134 = vmatpush.xpose.msra.mxu0 0.0
    %135 = vmatpush.xpose.msra.mxu0 0.0
    %136 = vmatpush.xpose.msra.mxu0 0.0
    %137 = vmatpush.xpose.msra.mxu0 0.0
    %138 = vmatpush.xpose.msra.mxu0 0.0
    %139 = vmatpush.xpose.msra.mxu0 0.0
    %140 = vmatpush.xpose.msra.mxu0 0.0
    %141 = vmatpush.xpose.msra.mxu0 0.0
    %142 = vmatpush.xpose.msra.mxu0 0.0
    %143 = vmatpush.xpose.msra.mxu0 0.0
    %144 = vmatpush.xpose.msra.mxu0 0.0
    %145 = vmatpush.xpose.msra.mxu0 %v129
    %146 = vmatpush.xpose.msra.mxu0 %v126
    %147 = vmatmul.f32.gmra.mxu0 %v123
    %v148 = vpop.f32.mrf.mxu0
    %v149 = vadd.f32 0.0, %v148
    %150 = vdwg.mxu0
    %v152 = vsel %vm121, %v118, 0
    %v155 = vsel %vm121, %v119, 0
    %157 = vmatpush.xpose.msra.mxu0 0.0
    %158 = vmatpush.xpose.msra.mxu0 0.0
    %159 = vmatpush.xpose.msra.mxu0 0.0
    %160 = vmatpush.xpose.msra.mxu0 0.0
    %161 = vmatpush.xpose.msra.mxu0 0.0
    %162 = vmatpush.xpose.msra.mxu0 0.0
    %163 = vmatpush.xpose.msra.mxu0 0.0
    %164 = vmatpush.xpose.msra.mxu0 0.0
    %165 = vmatpush.xpose.msra.mxu0 0.0
    %166 = vmatpush.xpose.msra.mxu0 0.0
    %167 = vmatpush.xpose.msra.mxu0 0.0
    %168 = vmatpush.xpose.msra.mxu0 0.0
    %169 = vmatpush.xpose.msra.mxu0 0.0
    %170 = vmatpush.xpose.msra.mxu0 0.0
    %171 = vmatpush.xpose.msra.mxu0 %v155
    %172 = vmatpush.xpose.msra.mxu0 %v152
    %173 = vmatmul.f32.gmra.mxu0 %v123
    %v174 = vpop.f32.mrf.mxu0
    %v175 = vadd.f32 0.0, %v174
    %176 = vdwg.mxu0
    %v177 = vlaneseq
    %v178 = vand.u32 %v177, 127
    %v179 = vld [vmem:[%s6] sm:$0x1]
    %v180 = vld [vmem:[%s6 + $0x1] sm:$0x1]
    %181 = vset.pattern.permute.xlu0 0
    %182 = vperm.xlu0 %181, %v179
    %v183 = vpop.permute.xlu0 %182
    %v184 = vperm.slane %v183, 0
    %185 = vset.pattern.permute.xlu0 0
    %186 = vperm.xlu0 %185, %v180
    %v187 = vpop.permute.xlu0 %186
    %v188 = vperm.slane %v187, 0
    %vm189 = vcmp.lt.s32.totalorder %v178, %v184
    %vm190 = vcmp.lt.s32.totalorder %v178, %v188
    %v191 = vsel %vm189, %v149, -1000000.0
    %v192 = vsel %vm190, %v175, -1000000.0
    %vm193 = vcmask 122880
    %v194 = vsel %vm193, %v191, -inf
    %195 = vmax.xlane.f32.xlu0 %v194
    %v196 = vpop.xlane.xlu0 %195
    %v197 = vsel %vm193, %v192, -inf
    %198 = vmax.xlane.f32.xlu0 %v197
    %v199 = vpop.xlane.xlu0 %198
    %v200 = vsub.f32 %v191, %v196
    %v201 = vsub.f32 %v192, %v199
    %v202 = vmul.f32 %v200, 1.442695
    %v203 = vpow.pop %v202
    %v204 = vmul.f32 %v201, 1.442695
    %v205 = vpow.pop %v204
    %v206 = vsel %vm193, %v203, 0.0
    %207 = vadd.xlane.f32.xlu0 %v206
    %v208 = vpop.xlane.xlu0 %207
    %v209 = vsel %vm193, %v205, 0.0
    %210 = vadd.xlane.f32.xlu0 %v209
    %v211 = vpop.xlane.xlu0 %210
    %v212 = vrcp.pop %v208
    %v213 = vrcp.pop %v211
    %v214 = vmul.f32 %v203, %v212
    %v215 = vmul.f32 %v205, %v213
    %v216 = vld [vmem:[%s2] sm:$0xff]
    %v217 = vld [vmem:[%s2 + $0x8] sm:$0xff]
    %v218 = vld [vmem:[%s2 + $0x10] sm:$0xff]
    %v219 = vld [vmem:[%s2 + $0x18] sm:$0xff]
    %vm220 = vcmask 130048
    %v222 = vsel %vm220, %v214, 0
    %224 = vmatpush.msra.mxu0 0.0
    %225 = vmatpush.msra.mxu0 0.0
    %226 = vmatpush.msra.mxu0 0.0
    %227 = vmatpush.msra.mxu0 0.0
    %228 = vmatpush.msra.mxu0 0.0
    %229 = vmatpush.msra.mxu0 0.0
    %230 = vmatpush.msra.mxu0 0.0
    %231 = vmatpush.msra.mxu0 0.0
    %232 = vmatpush.msra.mxu0 0.0
    %233 = vmatpush.msra.mxu0 0.0
    %234 = vmatpush.msra.mxu0 0.0
    %235 = vmatpush.msra.mxu0 0.0
    %236 = vmatpush.msra.mxu0 0.0
    %237 = vmatpush.msra.mxu0 0.0
    %238 = vmatpush.msra.mxu0 %v217
    %239 = vmatpush.msra.mxu0 %v216
    %240 = vmatmul.f32.gmra.mxu0 %v222
    %v241 = vpop.f32.mrf.mxu0
    %v242 = vadd.f32 0.0, %v241
    %243 = vdwg.mxu0
    %v245 = vsel %vm220, %v215, 0
    %247 = vmatpush.msra.mxu0 0.0
    %248 = vmatpush.msra.mxu0 0.0
    %249 = vmatpush.msra.mxu0 0.0
    %250 = vmatpush.msra.mxu0 0.0
    %251 = vmatpush.msra.mxu0 0.0
    %252 = vmatpush.msra.mxu0 0.0
    %253 = vmatpush.msra.mxu0 0.0
    %254 = vmatpush.msra.mxu0 0.0
    %255 = vmatpush.msra.mxu0 0.0
    %256 = vmatpush.msra.mxu0 0.0
    %257 = vmatpush.msra.mxu0 0.0
    %258 = vmatpush.msra.mxu0 0.0
    %259 = vmatpush.msra.mxu0 0.0
    %260 = vmatpush.msra.mxu0 0.0
    %261 = vmatpush.msra.mxu0 %v219
    %262 = vmatpush.msra.mxu0 %v218
    %263 = vmatmul.f32.gmra.mxu0 %v245
    %v264 = vpop.f32.mrf.mxu0
    %v265 = vadd.f32 0.0, %v264
    %266 = vdwg.mxu0
    %v269 = vrot.slane %v265, 7
    %vm270 = vcmask 1041409
    %v271 = vsel %vm270, %v269, %v242
    %vm273 = vcmask 25600
    %274 = vst.msk [vmem:[#allocation2] sm:$0x3] %vm273, %v271
    // Predicated region
    $region30: #{tpu_custom_call.1} parent=1 // pred_check
      _
    $region31: #{tpu_custom_call.1} parent=1 // pred_check_branch
      %276 = sbr.rel (0) target = $region33
    $region32: #{tpu_custom_call.1} parent=1 // pred_region
      %278 = vsyncadd [#allocation3], 0
      %s280 = sshll.u32 [#allocation2], 4
      %s281 = int_to_ptr.vmem [resolvable:$true] %s280
      %s282 = sshll.u32 %s7, 4
      %s283 = int_to_ptr.hbm [resolvable:$true] %s282
      %285 = dma.vmem_to_hbm [thread:$0]  %s281, 32, %s283, [#allocation3]
    $region33: #{tpu_custom_call.1} parent=1 // pred_fallthru
      _
    // Predicated region
    $region34: #{tpu_custom_call.1} parent=1 // pred_check
      _
    $region35: #{tpu_custom_call.1} parent=1 // pred_check_branch
      %287 = sbr.rel (0) target = $region37
    $region36: #{tpu_custom_call.1} parent=1 // pred_region
      %289 = dma.done [#allocation3], 32
    $region37: #{tpu_custom_call.1} parent=1 // pred_fallthru
      _
    %290 = vsyncpa [#allocation3], 1

</llo_original>
